<compile_context>
chip_gen: v7x
topology: tpu7x:2x2x1
jax: 0.10.0
libtpu: 0.0.40
codegen_flags: <defaults>
</compile_context>

<pallas_src>
import functools
import math

import jax
import jax.numpy as jnp
from jax.experimental import pallas as pl
from jax.experimental.pallas import tpu as pltpu


def _round_up(n, m):
    return ((n + m - 1) // m) * m


# ---------------------------------------------------------------------------
# Kernel
# ---------------------------------------------------------------------------
def _self_attention_kernel(x_ref, wqkv_ref, o_ref, *, bt, seq, dp):
    """One grid step = `bt` batch elements; batch mean accumulated in o_ref."""
    step = pl.program_id(0)

    x2 = x_ref[...]                                   # (bt*seq, dp) bf16, bias lane = 1.0

    # Fused Q|K|V projection + biases in a single (rows, dp) x (dp, 3*dp) bf16
    # MXU matmul with f32 accumulation.  1/sqrt(D) is pre-folded into the Q
    # columns, 1/B into the V columns, and the biases ride the all-ones
    # padding lane of x.
    qkv = jnp.dot(x2, wqkv_ref[...], preferred_element_type=jnp.float32)

    # 128-lane-aligned slices -> no relayout copies.  Cast to bf16 before the
    # attention matmuls so the MXU gets its native single-pass input path.
    q3 = qkv[:, :dp].astype(jnp.bfloat16).reshape(bt, seq, dp)
    k3 = qkv[:, dp:2 * dp].astype(jnp.bfloat16).reshape(bt, seq, dp)
    v3 = qkv[:, 2 * dp:].astype(jnp.bfloat16).reshape(bt, seq, dp)

    # Batched scores: contract the feature axis of q and k directly (no
    # explicit k.T / XLU transpose).  Padded feature lanes are zero in both.
    scores = jnp.einsum("bnd,bmd->bnm", q3, k3,
                        preferred_element_type=jnp.float32)      # (bt, seq, seq)

    # Numerically stable softmax in f32; denominator reciprocal on the EUP.
    scores = scores - jnp.max(scores, axis=-1, keepdims=True)
    p = jnp.exp(scores)
    attn = p * pl.reciprocal(jnp.sum(p, axis=-1, keepdims=True), approx=True)

    out = jnp.einsum("bnm,bmd->bnd", attn.astype(jnp.bfloat16), v3,
                     preferred_element_type=jnp.float32)         # (bt, seq, dp)

    @pl.when(step == 0)
    def _():
        o_ref[...] = jnp.zeros_like(o_ref)

    # 1/B is already folded into the V columns, so this resident accumulator
    # holds the batch mean directly after the last step -- no epilogue.
    o_ref[...] += jnp.sum(out, axis=0)


# ---------------------------------------------------------------------------
# Batch-tile heuristic (VMEM-aware, sublane-aligned)
# ---------------------------------------------------------------------------
def _vmem_estimate_bytes(bt, seq, dp):
    rows = bt * seq
    x_blk = rows * dp * 2 * 2              # bf16 x block, double-buffered
    w_blk = dp * 3 * dp * 2 * 2            # bf16 fused weight (conservative: x2)
    qkv_f32 = rows * 3 * dp * 4            # fused projection result
    qkv_bf16 = rows * 3 * dp * 2           # bf16 copies fed to the MXU
    scores = 3 * bt * seq * seq * 4        # scores / p / attn (f32)
    attn_b16 = bt * seq * seq * 2
    out_f32 = rows * dp * 4
    o_acc = seq * dp * 4 * 2
    return x_blk + w_blk + qkv_f32 + qkv_bf16 + scores + attn_b16 + out_f32 + o_acc


def _min_rows_for_device():
    # v5e's MXU is 128x128, so 128 rows already fills it; v6e/v7x prefer 256.
    try:
        kind = jax.devices()[0].device_kind.lower()
        if "v5 lite" in kind or "v5e" in kind or "v5litepod" in kind:
            return 128
    except Exception:
        pass
    return 256


def _pick_block_batch(batch, seq, dp, *, vmem_cap_bytes=24 << 20):
    """Smallest batch divisor giving an MXU-filling, sublane-aligned, VMEM-safe
    row block; falls back to the largest aligned divisor under the cap, then to
    the full batch (block == full array is always a legal BlockSpec)."""
    min_rows = _min_rows_for_device()
    best_fit = None
    for d in range(1, batch + 1):
        if batch % d:
            continue
        if (d * seq) % 8:                  # keep the (rows, dp) block sublane-aligned
            continue
        if _vmem_estimate_bytes(d, seq, dp) > vmem_cap_bytes:
            break                          # estimate is monotone in d
        best_fit = d
        if d * seq >= min_rows:
            return d
    if best_fit is not None:
        return best_fit
    return batch                           # full-array block: always legal


# ---------------------------------------------------------------------------
# Wrapper / factory (weight prep hoisted out of the per-call path)
# ---------------------------------------------------------------------------
def make_self_attention(wq, bq, wk, bk, wv, bv, *, batch, seq, block_batch=None):
    """Returns a jitted callable x:(batch, seq, D) -> (seq, D).

    W* use the PyTorch nn.Linear (out, in) convention; b*: (D,).
    All weight prep (transpose, pad, scale/bias/mean folding, bf16 cast) is
    done once here, not per call.
    """
    D = wq.shape[0]
    Dp = _round_up(D + 1, 128)             # lane-dense feature axis; +1 spare lane
    bias_lane = D                          # carries the bias through the MXU
    scale = 1.0 / math.sqrt(D)             # x.size(-1) ** 0.5 (true D)
    inv_b = 1.0 / batch                    # batch mean folded into V

    def fold(w, b, s):                     # (D,D) (out,in) -> (Dp,Dp) scaled W^T + bias row
        wt = jnp.zeros((Dp, Dp), jnp.float32)
        wt = wt.at[:D, :D].set(w.astype(jnp.float32).T * s)
        wt = wt.at[bias_lane, :D].set(b.astype(jnp.float32) * s)
        return wt

    wqkv = jnp.concatenate(
        [fold(wq, bq, scale), fold(wk, bk, 1.0), fold(wv, bv, inv_b)], axis=1
    ).astype(jnp.bfloat16)                 # (Dp, 3*Dp), computed once
    wqkv = jax.device_put(wqkv)

    bt = block_batch if block_batch is not None else _pick_block_batch(batch, seq, Dp)
    assert batch % bt == 0, "block_batch must divide the batch size"
    n_steps = batch // bt
    rows = bt * seq

    kernel = functools.partial(_self_attention_kernel, bt=bt, seq=seq, dp=Dp)

    call = pl.pallas_call(
        kernel,
        out_shape=jax.ShapeDtypeStruct((seq, Dp), jnp.float32),
        grid_spec=pltpu.PrefetchScalarGridSpec(
            num_scalar_prefetch=0,
            grid=(n_steps,),
            in_specs=[
                pl.BlockSpec((rows, Dp), lambda i: (i, 0)),        # x rows (bf16)
                pl.BlockSpec((Dp, 3 * Dp), lambda i: (0, 0)),      # fused W (no re-DMA)
            ],
            out_specs=pl.BlockSpec((seq, Dp), lambda i: (0, 0)),   # resident accumulator
        ),
        compiler_params=pltpu.CompilerParams(
            dimension_semantics=("arbitrary",),    # batch-tile axis is a reduction (mean)
        ),
    )

    @jax.jit
    def fn(x):
        b, s, d = x.shape
        r = b * s
        x2 = x.reshape(r, d).astype(jnp.bfloat16)
        ones = jnp.ones((r, 1), jnp.bfloat16)                      # bias lane
        zpad = jnp.zeros((r, Dp - d - 1), jnp.bfloat16)
        x_p = jnp.concatenate([x2, ones, zpad], axis=1)            # (r, Dp), lane-dense
        out_p = call(x_p, wqkv)
        return out_p[:, :d]

    return fn


def self_attention_pallas(x, wq, bq, wk, bk, wv, bv, *, block_batch=None):
    """One-shot convenience wrapper (prefer make_self_attention for repeated calls)."""
    B, S, _ = x.shape
    fn = make_self_attention(wq, bq, wk, bk, wv, bv, batch=B, seq=S,
                             block_batch=block_batch)
    return fn(x)


# ---------------------------------------------------------------------------
# Reference + test
# ---------------------------------------------------------------------------
def _reference(x, wq, bq, wk, bk, wv, bv):
    q = x @ wq.T + bq
    k = x @ wk.T + bk
    v = x @ wv.T + bv
    scores = jnp.einsum("bsd,btd->bst", q, k) / math.sqrt(x.shape[-1])
    attn = jax.nn.softmax(scores, axis=-1)
    out = jnp.einsum("bst,btd->bsd", attn, v)
    return jnp.mean(out, axis=0)


if __name__ == "__main__":
    B, S, D = 2, 8, 32  # input_dim = D

    key = jax.random.PRNGKey(0)
    kx, kwq, kbq, kwk, kbk, kwv, kbv = jax.random.split(key, 7)

    x = jax.random.normal(kx, (B, S, D), dtype=jnp.float32)

    # Deterministic params mimicking nn.Linear's uniform(-1/sqrt(D), 1/sqrt(D)).
    bound = 1.0 / math.sqrt(D)
    wq = jax.random.uniform(kwq, (D, D), jnp.float32, -bound, bound)
    bq = jax.random.uniform(kbq, (D,), jnp.float32, -bound, bound)
    wk = jax.random.uniform(kwk, (D, D), jnp.float32, -bound, bound)
    bk = jax.random.uniform(kbk, (D,), jnp.float32, -bound, bound)
    wv = jax.random.uniform(kwv, (D, D), jnp.float32, -bound, bound)
    bv = jax.random.uniform(kbv, (D,), jnp.float32, -bound, bound)

    # Build once (weight prep hoisted), then call.
    attn_fn = make_self_attention(wq, bq, wk, bk, wv, bv, batch=B, seq=S)
    out = attn_fn(x)
    out = jax.block_until_ready(out)

    ref = _reference(x, wq, bq, wk, bk, wv, bv)
    assert out.shape == (S, D)
    # Tolerance accounts for bf16 inputs/weights/attn operands (f32 accumulation)
    # and the approximate EUP reciprocal in the softmax; observed error ~1e-3.
    assert jnp.allclose(out, ref, atol=2e-2, rtol=2e-2), "mismatch vs. reference"

    print("KERNEL_OK")
</pallas_src>

<mosaic_0001>
module attributes {stable_mosaic.version = 11 : i64} {
  func.func @_self_attention_kernel(%arg0: i32, %arg1: memref<16x128xbf16, #tpu.memory_space<vmem>>, %arg2: memref<128x384xbf16, #tpu.memory_space<vmem>>, %arg3: memref<8x128xf32, #tpu.memory_space<vmem>>) attributes {dimension_semantics = [#tpu.dimension_semantics<arbitrary>], iteration_bounds = array<i64: 1>, scalar_prefetch = 0 : i64, scratch_operands = 0 : i64, tpu.core_type = #tpu.core_type<tc>, window_params = [{transform_indices = @transform_0, window_bounds = array<i64: 16, 128>}, {pipeline_mode = #tpu.pipeline_mode<synchronous>, transform_indices = @transform_1, window_bounds = array<i64: 128, 384>}, {pipeline_mode = #tpu.pipeline_mode<synchronous>, transform_indices = @transform_2, window_bounds = array<i64: 8, 128>}]} {
    %c0 = arith.constant 0 : index
    %c0_0 = arith.constant 0 : index
    %0 = vector.load %arg1[%c0, %c0_0] : memref<16x128xbf16, #tpu.memory_space<vmem>>, vector<16x128xbf16>
    %c0_1 = arith.constant 0 : index
    %c0_2 = arith.constant 0 : index
    %1 = vector.load %arg2[%c0_1, %c0_2] : memref<128x384xbf16, #tpu.memory_space<vmem>>, vector<128x384xbf16>
    %cst = arith.constant dense<0.000000e+00> : vector<16x384xf32>
    %2 = tpu.matmul %0, %1, %cst {dimension_numbers = #tpu.dot_dimension_numbers<[1], [0], [0], [1], [0, 0, 1, 1], [], []>} : vector<16x128xbf16>, vector<128x384xbf16>, vector<16x384xf32> -> vector<16x384xf32>
    %3 = vector.extract_strided_slice %2 {offsets = [0, 0], sizes = [16, 128], strides = [1, 1]} : vector<16x384xf32> to vector<16x128xf32>
    %4 = arith.truncf %3 : vector<16x128xf32> to vector<16x128xbf16>
    %5 = vector.shape_cast %4 : vector<16x128xbf16> to vector<2x8x128xbf16>
    %6 = vector.extract_strided_slice %2 {offsets = [0, 128], sizes = [16, 128], strides = [1, 1]} : vector<16x384xf32> to vector<16x128xf32>
    %7 = arith.truncf %6 : vector<16x128xf32> to vector<16x128xbf16>
    %8 = vector.shape_cast %7 : vector<16x128xbf16> to vector<2x8x128xbf16>
    %9 = vector.extract_strided_slice %2 {offsets = [0, 256], sizes = [16, 128], strides = [1, 1]} : vector<16x384xf32> to vector<16x128xf32>
    %10 = arith.truncf %9 : vector<16x128xf32> to vector<16x128xbf16>
    %11 = vector.shape_cast %10 : vector<16x128xbf16> to vector<2x8x128xbf16>
    "tpu.trace_start"() <{level = 10 : i32, message = "bnd,bmd->bnm"}> : () -> ()
    %cst_3 = arith.constant dense<0.000000e+00> : vector<2x8x8xf32>
    %12 = tpu.matmul %5, %8, %cst_3 {dimension_numbers = #tpu.dot_dimension_numbers<[2], [2], [1], [1], [0, 0, 0, 1, 1, 1], [0], [0]>} : vector<2x8x128xbf16>, vector<2x8x128xbf16>, vector<2x8x8xf32> -> vector<2x8x8xf32>
    "tpu.trace_stop"() : () -> ()
    %cst_4 = arith.constant dense<0xFF800000> : vector<2x8xf32>
    %13 = vector.multi_reduction <maximumf>, %12, %cst_4 [2] : vector<2x8x8xf32> to vector<2x8xf32>
    %14 = vector.shape_cast %13 : vector<2x8xf32> to vector<2x8x1xf32>
    %15 = vector.broadcast %14 : vector<2x8x1xf32> to vector<2x8x8xf32>
    %16 = arith.subf %12, %15 : vector<2x8x8xf32>
    %17 = math.exp %16 : vector<2x8x8xf32>
    %cst_5 = arith.constant dense<0.000000e+00> : vector<2x8xf32>
    %18 = vector.multi_reduction <add>, %17, %cst_5 [2] : vector<2x8x8xf32> to vector<2x8xf32>
    %19 = vector.shape_cast %18 : vector<2x8xf32> to vector<2x8x1xf32>
    %20 = tpu.reciprocal %19 {approx = true} : vector<2x8x1xf32> -> vector<2x8x1xf32>
    %21 = vector.broadcast %20 : vector<2x8x1xf32> to vector<2x8x8xf32>
    %22 = arith.mulf %17, %21 : vector<2x8x8xf32>
    %23 = arith.truncf %22 : vector<2x8x8xf32> to vector<2x8x8xbf16>
    "tpu.trace_start"() <{level = 10 : i32, message = "bnm,bmd->bnd"}> : () -> ()
    %cst_6 = arith.constant dense<0.000000e+00> : vector<2x8x128xf32>
    %24 = tpu.matmul %23, %11, %cst_6 {dimension_numbers = #tpu.dot_dimension_numbers<[2], [1], [1], [2], [0, 0, 0, 1, 1, 2], [0], [0]>} : vector<2x8x8xbf16>, vector<2x8x128xbf16>, vector<2x8x128xf32> -> vector<2x8x128xf32>
    %c0_i32 = arith.constant 0 : i32
    "tpu.trace_stop"() : () -> ()
    %25 = arith.cmpi eq, %arg0, %c0_i32 : i32
    %26 = arith.extui %25 : i1 to i32
    %c0_i32_7 = arith.constant 0 : i32
    %27 = arith.cmpi ne, %26, %c0_i32_7 : i32
    scf.if %27 {
      %cst_13 = arith.constant 0.000000e+00 : f32
      %32 = vector.broadcast %cst_13 : f32 to vector<8x128xf32>
      %c0_14 = arith.constant 0 : index
      %c0_15 = arith.constant 0 : index
      %33 = vector.load %arg3[%c0_14, %c0_15] : memref<8x128xf32, #tpu.memory_space<vmem>>, vector<8x128xf32>
      tpu.vector_store %arg3[%c0_14, %c0_15], %32 {strides = array<i32>} : memref<8x128xf32, #tpu.memory_space<vmem>>, vector<8x128xf32>,
    } else {
    }
    %c0_8 = arith.constant 0 : index
    %c0_9 = arith.constant 0 : index
    %28 = vector.load %arg3[%c0_8, %c0_9] : memref<8x128xf32, #tpu.memory_space<vmem>>, vector<8x128xf32>
    %cst_10 = arith.constant dense<0.000000e+00> : vector<8x128xf32>
    %29 = vector.multi_reduction <add>, %24, %cst_10 [0] : vector<2x8x128xf32> to vector<8x128xf32>
    %30 = arith.addf %28, %29 : vector<8x128xf32>
    %c0_11 = arith.constant 0 : index
    %c0_12 = arith.constant 0 : index
    %31 = vector.load %arg3[%c0_11, %c0_12] : memref<8x128xf32, #tpu.memory_space<vmem>>, vector<8x128xf32>
    tpu.vector_store %arg3[%c0_11, %c0_12], %30 {strides = array<i32>} : memref<8x128xf32, #tpu.memory_space<vmem>>, vector<8x128xf32>,
    return
  }
  func.func @transform_0(%arg0: i32) -> (i32, i32) {
    %c0_i32 = arith.constant 0 : i32
    %c0_i32_0 = arith.constant 0 : i32
    return %arg0, %c0_i32 : i32, i32
  }
  func.func @transform_1(%arg0: i32) -> (i32, i32) {
    %c0_i32 = arith.constant 0 : i32
    %c0_i32_0 = arith.constant 0 : i32
    %c0_i32_1 = arith.constant 0 : i32
    return %c0_i32, %c0_i32_0 : i32, i32
  }
  func.func @transform_2(%arg0: i32) -> (i32, i32) {
    %c0_i32 = arith.constant 0 : i32
    %c0_i32_0 = arith.constant 0 : i32
    %c0_i32_1 = arith.constant 0 : i32
    return %c0_i32, %c0_i32_0 : i32, i32
  }
}

</mosaic_0001>

<llo_original>
// kernel: fn.1
$region0: #{fn.1}
  #allocation0 [shape = 'u32[]', space=smem, size = 0x4, offset = 0x4, fixed_abs, tag = 'smem constant byte address 0x4 - core index']
  #allocation1 [shape = 'u32[144,128]{1,0:T(1,128)}', space=vmem, size = 0x12000, scoped, tag = 'internal scratch']
  %s0 = inlined_call_operand.vmem [shape: bf16[16,128], index: 0, kind: input, shape index: {}]
  %s1 = inlined_call_operand.vmem [shape: bf16[128,384], index: 1, kind: input, shape index: {}]
  %s2 = inlined_call_operand.hbm [shape: f32[8,128], index: 2, kind: output, shape index: {}]
  %s3 = sld [smem:[#allocation0]]
  $region22: #{fn.1} parent=0
    _
  %s5 = ssub.s32 1, %s3
  %s6 = scalar_select 0, %s5, %s3
  $region1: #{fn.1} parent=0
    #allocation2 [shape = 'u8[4096]{0}', space=vmem, size = 0x1000, scoped, tag = 'output window, operand 0, single buffered']
    #allocation3 [shape = 's32[1]{0}', space=sflag, size = 0x4, scoped, tag = 'scoped memory for fn.1']
    %7 = vsyncpa [#allocation3], 0
    // Predicated region
    $region2: #{fn.1} parent=1 // pred_check
      _
    $region3: #{fn.1} parent=1 // pred_check_branch
      %9 = sbr.rel (0) target = $region5
    $region4: #{fn.1} parent=1 // pred_region
      _
    $region5: #{fn.1} parent=1 // pred_fallthru
      _
    // Predicated region
    $region6: #{fn.1} parent=1 // pred_check
      _
    $region7: #{fn.1} parent=1 // pred_check_branch
      %11 = sbr.rel (0) target = $region9
    $region8: #{fn.1} parent=1 // pred_region
      _
    $region9: #{fn.1} parent=1 // pred_fallthru
      _
    %v13 = vld [vmem:[%s0] sm:$0xf]
    %v14 = vld [vmem:[%s0 + $0x4] sm:$0xf]
    %v15 = vld [vmem:[%s1] sm:$0xff]
    %v16 = vld [vmem:[%s1 + $0x8] sm:$0xf]
    %v17 = vld [vmem:[%s1 + $0xc] sm:$0xff]
    %v18 = vld [vmem:[%s1 + $0x14] sm:$0xf]
    %v19 = vld [vmem:[%s1 + $0x18] sm:$0xff]
    %v20 = vld [vmem:[%s1 + $0x20] sm:$0xf]
    %v21 = vld [vmem:[%s1 + $0x24] sm:$0xff]
    %v22 = vld [vmem:[%s1 + $0x2c] sm:$0xf]
    %v23 = vld [vmem:[%s1 + $0x30] sm:$0xff]
    %v24 = vld [vmem:[%s1 + $0x38] sm:$0xf]
    %v25 = vld [vmem:[%s1 + $0x3c] sm:$0xff]
    %v26 = vld [vmem:[%s1 + $0x44] sm:$0xf]
    %v27 = vld [vmem:[%s1 + $0x48] sm:$0xff]
    %v28 = vld [vmem:[%s1 + $0x50] sm:$0xf]
    %v29 = vld [vmem:[%s1 + $0x54] sm:$0xff]
    %v30 = vld [vmem:[%s1 + $0x5c] sm:$0xf]
    %v31 = vld [vmem:[%s1 + $0x60] sm:$0xff]
    %v32 = vld [vmem:[%s1 + $0x68] sm:$0xf]
    %v33 = vld [vmem:[%s1 + $0x6c] sm:$0xff]
    %v34 = vld [vmem:[%s1 + $0x74] sm:$0xf]
    %v35 = vld [vmem:[%s1 + $0x78] sm:$0xff]
    %v36 = vld [vmem:[%s1 + $0x80] sm:$0xf]
    %v37 = vld [vmem:[%s1 + $0x84] sm:$0xff]
    %v38 = vld [vmem:[%s1 + $0x8c] sm:$0xf]
    %v39 = vld [vmem:[%s1 + $0x90] sm:$0xff]
    %v40 = vld [vmem:[%s1 + $0x98] sm:$0xf]
    %v41 = vld [vmem:[%s1 + $0x9c] sm:$0xff]
    %v42 = vld [vmem:[%s1 + $0xa4] sm:$0xf]
    %v43 = vld [vmem:[%s1 + $0xa8] sm:$0xff]
    %v44 = vld [vmem:[%s1 + $0xb0] sm:$0xf]
    %v45 = vld [vmem:[%s1 + $0xb4] sm:$0xff]
    %v46 = vld [vmem:[%s1 + $0xbc] sm:$0xf]
    %v49 = vunpack.c.l.b16 %v13
    %v50 = vunpack.c.l.b16 %v14
    %v51 = vpack.c.b16 %v50, %v49
    %v85 = vunpack.c.l.b16 %v15
    %v86 = vunpack.c.h.b16 %v15
    %v87 = vunpack.c.l.b16 %v16
    %v88 = vunpack.c.l.b16 %v17
    %v89 = vunpack.c.h.b16 %v17
    %v90 = vunpack.c.l.b16 %v18
    %v91 = vunpack.c.l.b16 %v19
    %v92 = vunpack.c.h.b16 %v19
    %v93 = vunpack.c.l.b16 %v20
    %v94 = vunpack.c.l.b16 %v21
    %v95 = vunpack.c.h.b16 %v21
    %v96 = vunpack.c.l.b16 %v22
    %v97 = vunpack.c.l.b16 %v23
    %v98 = vunpack.c.h.b16 %v23
    %v99 = vunpack.c.l.b16 %v24
    %v100 = vunpack.c.l.b16 %v25
    %v101 = vunpack.c.h.b16 %v25
    %v102 = vunpack.c.l.b16 %v26
    %v103 = vunpack.c.l.b16 %v27
    %v104 = vunpack.c.h.b16 %v27
    %v105 = vunpack.c.l.b16 %v28
    %v106 = vunpack.c.l.b16 %v29
    %v107 = vunpack.c.h.b16 %v29
    %v108 = vunpack.c.l.b16 %v30
    %v109 = vunpack.c.l.b16 %v31
    %v110 = vunpack.c.h.b16 %v31
    %v111 = vunpack.c.l.b16 %v32
    %v112 = vunpack.c.l.b16 %v33
    %v113 = vunpack.c.h.b16 %v33
    %v114 = vunpack.c.l.b16 %v34
    %v115 = vunpack.c.l.b16 %v35
    %v116 = vunpack.c.h.b16 %v35
    %v117 = vunpack.c.l.b16 %v36
    %v118 = vunpack.c.l.b16 %v37
    %v119 = vunpack.c.h.b16 %v37
    %v120 = vunpack.c.l.b16 %v38
    %v121 = vunpack.c.l.b16 %v39
    %v122 = vunpack.c.h.b16 %v39
    %v123 = vunpack.c.l.b16 %v40
    %v124 = vunpack.c.l.b16 %v41
    %v125 = vunpack.c.h.b16 %v41
    %v126 = vunpack.c.l.b16 %v42
    %v127 = vunpack.c.l.b16 %v43
    %v128 = vunpack.c.h.b16 %v43
    %v129 = vunpack.c.l.b16 %v44
    %v130 = vunpack.c.l.b16 %v45
    %v131 = vunpack.c.h.b16 %v45
    %v132 = vunpack.c.l.b16 %v46
    %v133 = vpack.c.b16 %v88, %v85
    %v134 = vpack.c.b16 %v89, %v86
    %v135 = vpack.c.b16 %v90, %v87
    %v136 = vpack.c.b16 %v94, %v91
    %v137 = vpack.c.b16 %v95, %v92
    %v138 = vpack.c.b16 %v96, %v93
    %v139 = vpack.c.b16 %v100, %v97
    %v140 = vpack.c.b16 %v101, %v98
    %v141 = vpack.c.b16 %v102, %v99
    %v142 = vpack.c.b16 %v106, %v103
    %v143 = vpack.c.b16 %v107, %v104
    %v144 = vpack.c.b16 %v108, %v105
    %v145 = vpack.c.b16 %v112, %v109
    %v146 = vpack.c.b16 %v113, %v110
    %v147 = vpack.c.b16 %v114, %v111
    %v148 = vpack.c.b16 %v118, %v115
    %v149 = vpack.c.b16 %v119, %v116
    %v150 = vpack.c.b16 %v120, %v117
    %v151 = vpack.c.b16 %v124, %v121
    %v152 = vpack.c.b16 %v125, %v122
    %v153 = vpack.c.b16 %v126, %v123
    %v154 = vpack.c.b16 %v130, %v127
    %v155 = vpack.c.b16 %v131, %v128
    %v156 = vpack.c.b16 %v132, %v129
    %181 = vmatprep.subr.bf16.mxu0 %v134
    %182 = vmatpush1.bf16.msra.mxu0 %v133
    %183 = vmatprep.subr.bf16.mxu0 %v137
    %184 = vmatpush1.bf16.msra.mxu0 %v136
    %185 = vmatprep.subr.bf16.mxu0 %v140
    %186 = vmatpush1.bf16.msra.mxu0 %v139
    %187 = vmatprep.subr.bf16.mxu0 %v143
    %188 = vmatpush1.bf16.msra.mxu0 %v142
    %189 = vmatprep.subr.bf16.mxu0 %v146
    %190 = vmatpush1.bf16.msra.mxu0 %v145
    %191 = vmatprep.subr.bf16.mxu0 %v149
    %192 = vmatpush1.bf16.msra.mxu0 %v148
    %193 = vmatprep.subr.bf16.mxu0 %v152
    %194 = vmatpush1.bf16.msra.mxu0 %v151
    %195 = vmatprep.subr.bf16.mxu0 %v155
    %196 = vmatpush1.bf16.msra.mxu0 %v154
    %197 = vmatprep.subr.bf16.mxu0 0
    %198 = vmatpush1.bf16.msra.mxu0 0
    %199 = vmatprep.subr.bf16.mxu0 0
    %200 = vmatpush1.bf16.msra.mxu0 0
    %201 = vmatprep.subr.bf16.mxu0 0
    %202 = vmatpush1.bf16.msra.mxu0 0
    %203 = vmatprep.subr.bf16.mxu0 0
    %204 = vmatpush1.bf16.msra.mxu0 0
    %205 = vmatprep.subr.bf16.mxu0 0
    %206 = vmatpush1.bf16.msra.mxu0 0
    %207 = vmatprep.subr.bf16.mxu0 0
    %208 = vmatpush1.bf16.msra.mxu0 0
    %209 = vmatprep.subr.bf16.mxu0 0
    %210 = vmatpush1.bf16.msra.mxu0 0
    %211 = vmatprep.subr.bf16.mxu0 0
    %212 = vmatpush1.bf16.msra.mxu0 0
    %213 = vmatprep.mubr.bf16.mxu0 0
    %214 = vmatmul.mubr.bf16.gmra.mrb[0].mxu0 %v51
    %v215 = vpop.f32.mrb[0].mxu0
    %v216 = vadd.f32 0.0, %v215
    %v217 = vpop.f32.mrb[0].mxu0
    %v218 = vadd.f32 0.0, %v217
    %v219 = vpop.f32.mrb[0].mxu0
    %v220 = vadd.f32 0.0, %v219
    %v221 = vpop.f32.mrb[0].mxu0
    %v222 = vadd.f32 0.0, %v221
    %223 = vdwg.mxu0
    %224 = vmatprep.subr.bf16.mxu0 0
    %225 = vmatpush1.bf16.msra.mxu0 %v135
    %226 = vmatprep.subr.bf16.mxu0 0
    %227 = vmatpush1.bf16.msra.mxu0 %v138
    %228 = vmatprep.subr.bf16.mxu0 0
    %229 = vmatpush1.bf16.msra.mxu0 %v141
    %230 = vmatprep.subr.bf16.mxu0 0
    %231 = vmatpush1.bf16.msra.mxu0 %v144
    %232 = vmatprep.subr.bf16.mxu0 0
    %233 = vmatpush1.bf16.msra.mxu0 %v147
    %234 = vmatprep.subr.bf16.mxu0 0
    %235 = vmatpush1.bf16.msra.mxu0 %v150
    %236 = vmatprep.subr.bf16.mxu0 0
    %237 = vmatpush1.bf16.msra.mxu0 %v153
    %238 = vmatprep.subr.bf16.mxu0 0
    %239 = vmatpush1.bf16.msra.mxu0 %v156
    %240 = vmatprep.subr.bf16.mxu0 0
    %241 = vmatpush1.bf16.msra.mxu0 0
    %242 = vmatprep.subr.bf16.mxu0 0
    %243 = vmatpush1.bf16.msra.mxu0 0
    %244 = vmatprep.subr.bf16.mxu0 0
    %245 = vmatpush1.bf16.msra.mxu0 0
    %246 = vmatprep.subr.bf16.mxu0 0
    %247 = vmatpush1.bf16.msra.mxu0 0
    %248 = vmatprep.subr.bf16.mxu0 0
    %249 = vmatpush1.bf16.msra.mxu0 0
    %250 = vmatprep.subr.bf16.mxu0 0
    %251 = vmatpush1.bf16.msra.mxu0 0
    %252 = vmatprep.subr.bf16.mxu0 0
    %253 = vmatpush1.bf16.msra.mxu0 0
    %254 = vmatprep.subr.bf16.mxu0 0
    %255 = vmatpush1.bf16.msra.mxu0 0
    %256 = vmatprep.mubr.bf16.mxu0 0
    %257 = vmatmul.mubr.bf16.gmra.mrb[0].mxu0 %v51
    %v258 = vpop.f32.mrb[0].mxu0
    %v259 = vadd.f32 0.0, %v258
    %v260 = vpop.f32.mrb[0].mxu0
    %v261 = vpop.f32.mrb[0].mxu0
    %v262 = vadd.f32 0.0, %v261
    %v263 = vpop.f32.mrb[0].mxu0
    %264 = vdwg.mxu0
    %v265 = vpack.c.bf16 %v220, %v216
    %v267 = vunpack.c.l.b16 %v265
    %v268 = vunpack.c.h.b16 %v265
    %v269 = vpack.c.b16 %v267, %v267
    %v270 = vpack.c.b16 %v268, %v268
    %v273 = vpack.c.bf16 %v222, %v218
    %v275 = vunpack.c.l.b16 %v273
    %v276 = vunpack.c.h.b16 %v273
    %v277 = vpack.c.b16 %v275, %v275
    %v278 = vpack.c.b16 %v276, %v276
    %v281 = vpack.c.bf16 %v262, %v259
    %v283 = vunpack.c.l.b16 %v281
    %v284 = vunpack.c.h.b16 %v281
    %v285 = vpack.c.b16 %v283, %v283
    %v286 = vpack.c.b16 %v284, %v284
    %287 = vmatprep.subr.bf16.mxu0 0
    %288 = vmatpush1.bf16.xpose.msra.mxu0 %v277
    %289 = vmatprep.subr.bf16.mxu0 0
    %290 = vmatpush1.bf16.xpose.msra.mxu0 0
    %291 = vmatprep.subr.bf16.mxu0 0
    %292 = vmatpush1.bf16.xpose.msra.mxu0 0
    %293 = vmatprep.subr.bf16.mxu0 0
    %294 = vmatpush1.bf16.xpose.msra.mxu0 0
    %295 = vmatprep.subr.bf16.mxu0 0
    %296 = vmatpush1.bf16.xpose.msra.mxu0 0
    %297 = vmatprep.subr.bf16.mxu0 0
    %298 = vmatpush1.bf16.xpose.msra.mxu0 0
    %299 = vmatprep.subr.bf16.mxu0 0
    %300 = vmatpush1.bf16.xpose.msra.mxu0 0
    %301 = vmatprep.subr.bf16.mxu0 0
    %302 = vmatpush1.bf16.xpose.msra.mxu0 0
    %303 = vmatprep.subr.bf16.mxu0 0
    %304 = vmatpush1.bf16.xpose.msra.mxu0 0
    %305 = vmatprep.subr.bf16.mxu0 0
    %306 = vmatpush1.bf16.xpose.msra.mxu0 0
    %307 = vmatprep.subr.bf16.mxu0 0
    %308 = vmatpush1.bf16.xpose.msra.mxu0 0
    %309 = vmatprep.subr.bf16.mxu0 0
    %310 = vmatpush1.bf16.xpose.msra.mxu0 0
    %311 = vmatprep.subr.bf16.mxu0 0
    %312 = vmatpush1.bf16.xpose.msra.mxu0 0
    %313 = vmatprep.subr.bf16.mxu0 0
    %314 = vmatpush1.bf16.xpose.msra.mxu0 0
    %315 = vmatprep.subr.bf16.mxu0 0
    %316 = vmatpush1.bf16.xpose.msra.mxu0 0
    %317 = vmatprep.subr.bf16.mxu0 0
    %318 = vmatpush1.bf16.xpose.msra.mxu0 0
    %319 = vmatprep.mubr.bf16.mxu0 0
    %320 = vmatmul.mubr.bf16.gmra.mrb[0].mxu0 %v269
    %v321 = vpop.f32.mrb[0].mxu0
    %v322 = vadd.f32 0.0, %v321
    %v323 = vpop.f32.mrb[0].mxu0
    %v324 = vpop.f32.mrb[0].mxu0
    %v325 = vpop.f32.mrb[0].mxu0
    %326 = vdwg.mxu0
    %327 = vmatprep.subr.bf16.mxu0 0
    %328 = vmatpush1.bf16.xpose.msra.mxu0 %v278
    %329 = vmatprep.subr.bf16.mxu0 0
    %330 = vmatpush1.bf16.xpose.msra.mxu0 0
    %331 = vmatprep.subr.bf16.mxu0 0
    %332 = vmatpush1.bf16.xpose.msra.mxu0 0
    %333 = vmatprep.subr.bf16.mxu0 0
    %334 = vmatpush1.bf16.xpose.msra.mxu0 0
    %335 = vmatprep.subr.bf16.mxu0 0
    %336 = vmatpush1.bf16.xpose.msra.mxu0 0
    %337 = vmatprep.subr.bf16.mxu0 0
    %338 = vmatpush1.bf16.xpose.msra.mxu0 0
    %339 = vmatprep.subr.bf16.mxu0 0
    %340 = vmatpush1.bf16.xpose.msra.mxu0 0
    %341 = vmatprep.subr.bf16.mxu0 0
    %342 = vmatpush1.bf16.xpose.msra.mxu0 0
    %343 = vmatprep.subr.bf16.mxu0 0
    %344 = vmatpush1.bf16.xpose.msra.mxu0 0
    %345 = vmatprep.subr.bf16.mxu0 0
    %346 = vmatpush1.bf16.xpose.msra.mxu0 0
    %347 = vmatprep.subr.bf16.mxu0 0
    %348 = vmatpush1.bf16.xpose.msra.mxu0 0
    %349 = vmatprep.subr.bf16.mxu0 0
    %350 = vmatpush1.bf16.xpose.msra.mxu0 0
    %351 = vmatprep.subr.bf16.mxu0 0
    %352 = vmatpush1.bf16.xpose.msra.mxu0 0
    %353 = vmatprep.subr.bf16.mxu0 0
    %354 = vmatpush1.bf16.xpose.msra.mxu0 0
    %355 = vmatprep.subr.bf16.mxu0 0
    %356 = vmatpush1.bf16.xpose.msra.mxu0 0
    %357 = vmatprep.subr.bf16.mxu0 0
    %358 = vmatpush1.bf16.xpose.msra.mxu0 0
    %359 = vmatprep.mubr.bf16.mxu0 0
    %360 = vmatmul.mubr.bf16.gmra.mrb[0].mxu0 %v270
    %v361 = vpop.f32.mrb[0].mxu0
    %v362 = vadd.f32 0.0, %v361
    %v363 = vpop.f32.mrb[0].mxu0
    %v364 = vpop.f32.mrb[0].mxu0
    %v365 = vpop.f32.mrb[0].mxu0
    %366 = vdwg.mxu0
    %vm367 = vcmask 64512
    %v368 = vsel %vm367, %v322, -inf
    %369 = vmax.xlane.f32.xlu0 %v368
    %v370 = vpop.xlane.xlu0 %369
    %v371 = vsel %vm367, %v362, -inf
    %372 = vmax.xlane.f32.xlu0 %v371
    %v373 = vpop.xlane.xlu0 %372
    %v374 = vsub.f32 %v322, %v370
    %v375 = vsub.f32 %v362, %v373
    %v376 = vmul.f32 %v374, 1.442695
    %v377 = vpow.pop %v376
    %v378 = vmul.f32 %v375, 1.442695
    %v379 = vpow.pop %v378
    %v380 = vsel %vm367, %v377, 0.0
    %381 = vadd.xlane.f32.xlu0 %v380
    %v382 = vpop.xlane.xlu0 %381
    %v383 = vsel %vm367, %v379, 0.0
    %384 = vadd.xlane.f32.xlu0 %v383
    %v385 = vpop.xlane.xlu0 %384
    %v386 = vrcp.pop %v382
    %v387 = vrcp.pop %v385
    %v388 = vmul.f32 %v377, %v386
    %v389 = vmul.f32 %v379, %v387
    %v390 = vpack.c.bf16 %v388, %v388
    %v391 = vpack.c.bf16 %v389, %v389
    %v393 = vsel %vm367, %v390, 0
    %vm395 = vcmask 1043456
    %v397 = vsel %vm395, %v285, 0
    %399 = vmatprep.subr.bf16.mxu0 0
    %400 = vmatpush1.bf16.msra.mxu0 %v397
    %401 = vmatprep.subr.bf16.mxu0 0
    %402 = vmatpush1.bf16.msra.mxu0 0
    %403 = vmatprep.subr.bf16.mxu0 0
    %404 = vmatpush1.bf16.msra.mxu0 0
    %405 = vmatprep.subr.bf16.mxu0 0
    %406 = vmatpush1.bf16.msra.mxu0 0
    %407 = vmatprep.subr.bf16.mxu0 0
    %408 = vmatpush1.bf16.msra.mxu0 0
    %409 = vmatprep.subr.bf16.mxu0 0
    %410 = vmatpush1.bf16.msra.mxu0 0
    %411 = vmatprep.subr.bf16.mxu0 0
    %412 = vmatpush1.bf16.msra.mxu0 0
    %413 = vmatprep.subr.bf16.mxu0 0
    %414 = vmatpush1.bf16.msra.mxu0 0
    %415 = vmatprep.subr.bf16.mxu0 0
    %416 = vmatpush1.bf16.msra.mxu0 0
    %417 = vmatprep.subr.bf16.mxu0 0
    %418 = vmatpush1.bf16.msra.mxu0 0
    %419 = vmatprep.subr.bf16.mxu0 0
    %420 = vmatpush1.bf16.msra.mxu0 0
    %421 = vmatprep.subr.bf16.mxu0 0
    %422 = vmatpush1.bf16.msra.mxu0 0
    %423 = vmatprep.subr.bf16.mxu0 0
    %424 = vmatpush1.bf16.msra.mxu0 0
    %425 = vmatprep.subr.bf16.mxu0 0
    %426 = vmatpush1.bf16.msra.mxu0 0
    %427 = vmatprep.subr.bf16.mxu0 0
    %428 = vmatpush1.bf16.msra.mxu0 0
    %429 = vmatprep.subr.bf16.mxu0 0
    %430 = vmatpush1.bf16.msra.mxu0 0
    %431 = vmatprep.mubr.bf16.mxu0 0
    %432 = vmatmul.mubr.bf16.gmra.mrb[0].mxu0 %v393
    %v433 = vpop.f32.mrb[0].mxu0
    %v434 = vadd.f32 0.0, %v433
    %v435 = vpop.f32.mrb[0].mxu0
    %v436 = vpop.f32.mrb[0].mxu0
    %v437 = vpop.f32.mrb[0].mxu0
    %438 = vdwg.mxu0
    %v440 = vsel %vm367, %v391, 0
    %v443 = vsel %vm395, %v286, 0
    %445 = vmatprep.subr.bf16.mxu0 0
    %446 = vmatpush1.bf16.msra.mxu0 %v443
    %447 = vmatprep.subr.bf16.mxu0 0
    %448 = vmatpush1.bf16.msra.mxu0 0
    %449 = vmatprep.subr.bf16.mxu0 0
    %450 = vmatpush1.bf16.msra.mxu0 0
    %451 = vmatprep.subr.bf16.mxu0 0
    %452 = vmatpush1.bf16.msra.mxu0 0
    %453 = vmatprep.subr.bf16.mxu0 0
    %454 = vmatpush1.bf16.msra.mxu0 0
    %455 = vmatprep.subr.bf16.mxu0 0
    %456 = vmatpush1.bf16.msra.mxu0 0
    %457 = vmatprep.subr.bf16.mxu0 0
    %458 = vmatpush1.bf16.msra.mxu0 0
    %459 = vmatprep.subr.bf16.mxu0 0
    %460 = vmatpush1.bf16.msra.mxu0 0
    %461 = vmatprep.subr.bf16.mxu0 0
    %462 = vmatpush1.bf16.msra.mxu0 0
    %463 = vmatprep.subr.bf16.mxu0 0
    %464 = vmatpush1.bf16.msra.mxu0 0
    %465 = vmatprep.subr.bf16.mxu0 0
    %466 = vmatpush1.bf16.msra.mxu0 0
    %467 = vmatprep.subr.bf16.mxu0 0
    %468 = vmatpush1.bf16.msra.mxu0 0
    %469 = vmatprep.subr.bf16.mxu0 0
    %470 = vmatpush1.bf16.msra.mxu0 0
    %471 = vmatprep.subr.bf16.mxu0 0
    %472 = vmatpush1.bf16.msra.mxu0 0
    %473 = vmatprep.subr.bf16.mxu0 0
    %474 = vmatpush1.bf16.msra.mxu0 0
    %475 = vmatprep.subr.bf16.mxu0 0
    %476 = vmatpush1.bf16.msra.mxu0 0
    %477 = vmatprep.mubr.bf16.mxu0 0
    %478 = vmatmul.mubr.bf16.gmra.mrb[0].mxu0 %v440
    %v479 = vpop.f32.mrb[0].mxu0
    %v480 = vadd.f32 0.0, %v479
    %v481 = vpop.f32.mrb[0].mxu0
    %v482 = vpop.f32.mrb[0].mxu0
    %v483 = vpop.f32.mrb[0].mxu0
    %484 = vdwg.mxu0
    %p485 = scmp.eq.s32.totalorder 0, 0
    // Predicated region
    $region10: #{fn.1} parent=1 // pred_check
      %p486 = pneg %p485
    $region11: #{fn.1} parent=1 // pred_check_branch
      %488 = sbr.rel (%p486) target = $region13
    $region12: #{fn.1} parent=1 // pred_region
      %489 = vst [vmem:[#allocation2] sm:$0xff] 0.0
    $region13: #{fn.1} parent=1 // pred_fallthru
      _
    %v490 = vld [vmem:[#allocation2] sm:$0xff]
    %v491 = vadd.f32 %v434, %v480
    %v492 = vadd.f32 %v490, %v491
    %493 = vst [vmem:[#allocation2] sm:$0xff] %v492
    // Predicated region
    $region14: #{fn.1} parent=1 // pred_check
      _
    $region15: #{fn.1} parent=1 // pred_check_branch
      %495 = sbr.rel (0) target = $region17
    $region16: #{fn.1} parent=1 // pred_region
      %s497 = ssub.s32 128, 128
      %498 = vsyncadd [#allocation3], %s497
      %s500 = sshll.u32 [#allocation2], 4
      %s501 = int_to_ptr.vmem [resolvable:$true] %s500
      %503 = dma.vmem_to_hbm [thread:$0]  %s501, 128, %s2, [#allocation3]
    $region17: #{fn.1} parent=1 // pred_fallthru
      _
    // Predicated region
    $region18: #{fn.1} parent=1 // pred_check
      _
    $region19: #{fn.1} parent=1 // pred_check_branch
      %505 = sbr.rel (0) target = $region21
    $region20: #{fn.1} parent=1 // pred_region
      %506 = dma.done [#allocation3], 128
    $region21: #{fn.1} parent=1 // pred_fallthru
      _
    %507 = vsyncpa [#allocation3], 1

</llo_original>
